<compile_context>
chip_gen: v6e
topology: v6e:2x2x1
jax: 0.10.0
libtpu: 0.0.40
codegen_flags: <defaults>
</compile_context>

<pallas_src>
import functools
import math

import jax
import jax.numpy as jnp
from jax.experimental import pallas as pl
from jax.experimental.pallas import tpu as pltpu


def _fit_tile(dim, target, align):
    """Largest multiple of `align` <= target that divides dim, else the full dim."""
    if dim <= target or dim % align:
        return dim
    t = min(target, dim)
    t -= t % align
    while t >= align:
        if dim % t == 0:
            return t
        t -= align
    return dim


# --------------------------- fused linear kernel -----------------------------
def _multi_linear_kernel(*refs, n_proj):
    # refs = [x, w_0..w_{P-1}, b_0..b_{P-1}, o_0..o_{P-1}, acc_0..acc_{P-1}]
    x_ref = refs[0]
    w_refs = refs[1:1 + n_proj]
    b_refs = refs[1 + n_proj:1 + 2 * n_proj]
    o_refs = refs[1 + 2 * n_proj:1 + 3 * n_proj]
    acc_refs = refs[1 + 3 * n_proj:1 + 4 * n_proj]

    k = pl.program_id(2)

    @pl.when(k == 0)
    def _init():
        for acc_ref in acc_refs:
            acc_ref[...] = jnp.zeros_like(acc_ref)

    # Load the activation tile once and reuse it for every projection.
    x = x_ref[...]
    for w_ref, acc_ref in zip(w_refs, acc_refs):
        # Contract on K directly (torch Linear weight layout (N, K), no transpose).
        acc_ref[...] += jax.lax.dot_general(
            x, w_ref[...],
            dimension_numbers=(((1,), (1,)), ((), ())),
            preferred_element_type=jnp.float32,
        )

    @pl.when(k == pl.num_programs(2) - 1)
    def _finalize():
        for o_ref, b_ref, acc_ref in zip(o_refs, b_refs, acc_refs):
            o_ref[...] = (acc_ref[...] + b_ref[...]).astype(o_ref.dtype)


def multi_linear(x, weights, biases, out_dtype=jnp.bfloat16,
                 tm=512, tn=512, tk=512):
    """Compute P projections x @ w_p.T + b_p of the SAME x in one pallas_call.

    x: (M, K) bf16.  weights[p]: (N, K) bf16.  biases[p]: (1, N) f32.
    Returns a tuple of P arrays of shape (M, N).
    """
    M, K = x.shape
    N = weights[0].shape[0]
    P = len(weights)
    for w in weights:
        assert w.shape == (N, K)

    # NOTE: on v6e (128 MiB VMEM, mem-bound roofline) tm=tn~768-1024 pays off;
    # 512-class tiles already saturate the MXU on v7x and v5e.
    tm = _fit_tile(M, tm, 8)
    tn = _fit_tile(N, tn, 128)
    tk = _fit_tile(K, tk, 128)
    grid = (M // tm, N // tn, K // tk)

    in_specs = [pl.BlockSpec((tm, tk), lambda i, j, k: (i, k))]
    in_specs += [pl.BlockSpec((tn, tk), lambda i, j, k: (j, k)) for _ in range(P)]
    in_specs += [pl.BlockSpec((1, tn), lambda i, j, k: (0, j)) for _ in range(P)]
    out_specs = [pl.BlockSpec((tm, tn), lambda i, j, k: (i, j)) for _ in range(P)]

    outs = pl.pallas_call(
        functools.partial(_multi_linear_kernel, n_proj=P),
        out_shape=tuple(jax.ShapeDtypeStruct((M, N), out_dtype) for _ in range(P)),
        grid_spec=pltpu.PrefetchScalarGridSpec(
            num_scalar_prefetch=0,
            grid=grid,
            in_specs=in_specs,
            out_specs=out_specs,
            scratch_shapes=[pltpu.VMEM((tm, tn), jnp.float32) for _ in range(P)],
        ),
        compiler_params=pltpu.CompilerParams(
            dimension_semantics=("parallel", "parallel", "arbitrary"),
            # ~10 MiB actual footprint at 512-class tiles, P=3; explicit limit
            # needed on v5e (16 MiB scoped default), comfortable on v7x (64 MiB).
            vmem_limit_bytes=32 * 1024 * 1024,
        ),
    )(x, *weights, *biases)
    return outs


# ----------------------------- attention kernel ------------------------------
def _attn_kernel(q_ref, k_ref, v_ref, o_ref, m_sc, l_sc, acc_sc,
                 *, heads_per_blk, head_dim):
    # q: (tq, G*Dh), k/v: (tkv, G*Dh) bf16.  Online softmax over the kv grid axis.
    # The 1/sqrt(Dh) scale is already folded into the Q projection weights.
    kv_idx = pl.program_id(3)

    @pl.when(kv_idx == 0)
    def _init():
        m_sc[...] = jnp.full_like(m_sc, -jnp.inf)
        l_sc[...] = jnp.zeros_like(l_sc)
        acc_sc[...] = jnp.zeros_like(acc_sc)

    for g in range(heads_per_blk):
        lo, hi = g * head_dim, (g + 1) * head_dim
        q = q_ref[:, lo:hi]                       # (tq, Dh)
        k = k_ref[:, lo:hi]                       # (tkv, Dh)
        v = v_ref[:, lo:hi]                       # (tkv, Dh)

        s = jax.lax.dot_general(                  # (tq, tkv) f32 scores
            q, k,
            dimension_numbers=(((1,), (1,)), ((), ())),
            preferred_element_type=jnp.float32,
        )

        m_prev = m_sc[g]                          # (tq, 1)
        m_new = jnp.maximum(m_prev, s.max(axis=-1, keepdims=True))
        alpha = jnp.exp(m_prev - m_new)
        p = jnp.exp(s - m_new)
        l_sc[g] = alpha * l_sc[g] + p.sum(axis=-1, keepdims=True)
        acc_sc[g] = alpha * acc_sc[g] + jax.lax.dot_general(
            p.astype(v.dtype), v,
            dimension_numbers=(((1,), (0,)), ((), ())),
            preferred_element_type=jnp.float32,
        )
        m_sc[g] = m_new

    @pl.when(kv_idx == pl.num_programs(3) - 1)
    def _finalize():
        for g in range(heads_per_blk):
            lo, hi = g * head_dim, (g + 1) * head_dim
            inv_l = pl.reciprocal(l_sc[g], approx=False)   # exact 1/l, EUP, ~free
            o_ref[:, lo:hi] = (acc_sc[g] * inv_l).astype(o_ref.dtype)


def mha_attention(q, k, v, *, batch, q_len, kv_len, num_heads, head_dim,
                  tq=256, tkv=512):
    """q: (batch*q_len, E), k/v: (batch*kv_len, E) bf16, batch-first token rows.

    Heads are read straight out of the E axis via the column index_map, so no
    head split/merge relayout ever touches HBM.  Output is (batch*q_len, E) bf16.
    """
    E = num_heads * head_dim
    Mq, Mk = batch * q_len, batch * kv_len
    assert q.shape == (Mq, E) and k.shape == (Mk, E) and v.shape == (Mk, E)

    # Head grouping: smallest divisor G of num_heads whose block width G*Dh is a
    # multiple of 128 lanes (e.g. two 64-dim heads per block).  Fallback: all
    # heads in one block (width == E == full array dim, always a legal block).
    G = num_heads
    for g in range(1, num_heads + 1):
        if num_heads % g == 0 and (g * head_dim) % 128 == 0:
            G = g
            break
    wblk = G * head_dim

    tq = _fit_tile(q_len, tq, 8)
    tkv = _fit_tile(kv_len, tkv, 8)
    # TODO(synk): non-8-aligned sequence lengths with batch > 1 would need
    # padding of the token axis; unsupported here.
    assert tq % 8 == 0 or tq == Mq, "query tile must be sublane (8) aligned"
    assert tkv % 8 == 0 or tkv == Mk, "kv tile must be sublane (8) aligned"
    nlq = q_len // tq
    nkv = kv_len // tkv
    grid = (batch, num_heads // G, nlq, nkv)

    kernel = functools.partial(_attn_kernel, heads_per_blk=G, head_dim=head_dim)
    return pl.pallas_call(
        kernel,
        out_shape=jax.ShapeDtypeStruct((Mq, E), jnp.bfloat16),
        grid_spec=pltpu.PrefetchScalarGridSpec(
            num_scalar_prefetch=0,
            grid=grid,
            in_specs=[
                pl.BlockSpec((tq, wblk), lambda n, hg, lq, kv: (n * nlq + lq, hg)),
                pl.BlockSpec((tkv, wblk), lambda n, hg, lq, kv: (n * nkv + kv, hg)),
                pl.BlockSpec((tkv, wblk), lambda n, hg, lq, kv: (n * nkv + kv, hg)),
            ],
            out_specs=pl.BlockSpec((tq, wblk),
                                   lambda n, hg, lq, kv: (n * nlq + lq, hg)),
            scratch_shapes=[
                pltpu.VMEM((G, tq, 1), jnp.float32),         # running max
                pltpu.VMEM((G, tq, 1), jnp.float32),         # running sum
                pltpu.VMEM((G, tq, head_dim), jnp.float32),  # output accumulator
            ],
        ),
        compiler_params=pltpu.CompilerParams(
            dimension_semantics=("parallel", "parallel", "parallel", "arbitrary"),
            # ~2-3 MiB footprint at tq=256/tkv=512, wblk=128; well under every
            # generation's scoped VMEM, plenty of headroom on v7x.
            vmem_limit_bytes=32 * 1024 * 1024,
        ),
    )(q, k, v)


# ------------------------------ module wrapper --------------------------------
class MultiHeadAttentionPallas:
    """Mirrors torch.nn.MultiheadAttention(embed_dim, num_heads) default forward."""

    def __init__(self, embed_dim, num_heads, key):
        assert embed_dim % num_heads == 0
        self.embed_dim = embed_dim
        self.num_heads = num_heads
        self.head_dim = embed_dim // num_heads

        k1, k2, k3, k4 = jax.random.split(key, 4)
        bound = 1.0 / math.sqrt(embed_dim)
        self.in_proj_weight = jax.random.uniform(
            k1, (3 * embed_dim, embed_dim), jnp.float32, -bound, bound)
        self.in_proj_bias = jax.random.uniform(
            k2, (3 * embed_dim,), jnp.float32, -bound, bound)
        self.out_proj_weight = jax.random.uniform(
            k3, (embed_dim, embed_dim), jnp.float32, -bound, bound)
        self.out_proj_bias = jax.random.uniform(
            k4, (embed_dim,), jnp.float32, -bound, bound)

        # Kernel-side copies, built once: bf16 weights (no per-call cast kernel)
        # and the 1/sqrt(Dh) softmax scale folded into the Q projection.
        E = embed_dim
        scale = 1.0 / math.sqrt(self.head_dim)
        wq, wk, wv = (self.in_proj_weight[:E],
                      self.in_proj_weight[E:2 * E],
                      self.in_proj_weight[2 * E:])
        bq, bk, bv = (self.in_proj_bias[:E],
                      self.in_proj_bias[E:2 * E],
                      self.in_proj_bias[2 * E:])
        self._wq = (wq * scale).astype(jnp.bfloat16)
        self._wk = wk.astype(jnp.bfloat16)
        self._wv = wv.astype(jnp.bfloat16)
        self._wo = self.out_proj_weight.astype(jnp.bfloat16)
        self._bq = (bq * scale).reshape(1, E).astype(jnp.float32)
        self._bk = bk.reshape(1, E).astype(jnp.float32)
        self._bv = bv.reshape(1, E).astype(jnp.float32)
        self._bo = self.out_proj_bias.reshape(1, E).astype(jnp.float32)

    def __call__(self, query, key, value):
        # query: (L, N, E), key/value: (S, N, E) -> output (L, N, E)
        L, N, E = query.shape
        S = key.shape[0]
        H, Dh = self.num_heads, self.head_dim

        def tokens(x, T):
            # (T, N, E) seq-major -> (N*T, E) batch-first bf16 token rows.
            # TODO(synk): this boundary reorder stays an XLA transpose; every
            # projected activation downstream keeps its layout end-to-end.
            return x.transpose(1, 0, 2).reshape(N * T, E).astype(jnp.bfloat16)

        same_qkv = (query is key) and (key is value)
        same_kv = key is value

        q_x = tokens(query, L)
        if same_qkv:
            # Single fused pallas_call: x read once for all three projections.
            q, k, v = multi_linear(q_x, [self._wq, self._wk, self._wv],
                                   [self._bq, self._bk, self._bv])
        else:
            k_x = tokens(key, S)
            v_x = k_x if same_kv else tokens(value, S)
            (q,) = multi_linear(q_x, [self._wq], [self._bq])
            if same_kv:
                k, v = multi_linear(k_x, [self._wk, self._wv],
                                    [self._bk, self._bv])
            else:
                (k,) = multi_linear(k_x, [self._wk], [self._bk])
                (v,) = multi_linear(v_x, [self._wv], [self._bv])

        # Heads sliced via BlockSpec column index_map; output lands in the
        # (N*L, E) layout the output projection consumes directly.
        o = mha_attention(q, k, v, batch=N, q_len=L, kv_len=S,
                          num_heads=H, head_dim=Dh)

        (out,) = multi_linear(o, [self._wo], [self._bo], out_dtype=jnp.float32)
        return out.reshape(N, L, E).transpose(1, 0, 2)

    # Pure-JAX f32 reference for correctness checking.
    def reference(self, query, key, value):
        L, N, E = query.shape
        S = key.shape[0]
        H, Dh = self.num_heads, self.head_dim
        wq, wk, wv = jnp.split(self.in_proj_weight, 3, axis=0)
        bq, bk, bv = jnp.split(self.in_proj_bias, 3, axis=0)
        q = query.reshape(L * N, E) @ wq.T + bq
        k = key.reshape(S * N, E) @ wk.T + bk
        v = value.reshape(S * N, E) @ wv.T + bv
        qh = q.reshape(L, N, H, Dh).transpose(1, 2, 0, 3)
        kh = k.reshape(S, N, H, Dh).transpose(1, 2, 0, 3)
        vh = v.reshape(S, N, H, Dh).transpose(1, 2, 0, 3)
        s = jnp.einsum("nhld,nhsd->nhls", qh, kh) / math.sqrt(Dh)
        p = jax.nn.softmax(s, axis=-1)
        oh = jnp.einsum("nhls,nhsd->nhld", p, vh)
        o = oh.transpose(2, 0, 1, 3).reshape(L * N, E)
        out = o @ self.out_proj_weight.T + self.out_proj_bias
        return out.reshape(L, N, E)


if __name__ == "__main__":
    embed_dim, num_heads = 128, 2      # head_dim 64 -> two heads per lane-dense 128 block
    L = S = 8
    N = 2

    root = jax.random.PRNGKey(0)
    kp, kq, kk, kv_key = jax.random.split(root, 4)

    module = MultiHeadAttentionPallas(embed_dim, num_heads, kp)

    query = jax.random.normal(kq, (L, N, embed_dim), jnp.float32)
    key = jax.random.normal(kk, (S, N, embed_dim), jnp.float32)
    value = jax.random.normal(kv_key, (S, N, embed_dim), jnp.float32)

    # Cross-attention path (separate Q / K / V projections).
    out = jax.block_until_ready(module(query, key, value))
    ref = module.reference(query, key, value)
    assert out.shape == (L, N, embed_dim)
    err = float(jnp.max(jnp.abs(out - ref)))
    assert jnp.allclose(out, ref, atol=5e-2, rtol=5e-2), f"max abs err {err}"

    # Self-attention path (fused QKV projection in a single pallas_call).
    out_sa = jax.block_until_ready(module(query, query, query))
    ref_sa = module.reference(query, query, query)
    err_sa = float(jnp.max(jnp.abs(out_sa - ref_sa)))
    assert jnp.allclose(out_sa, ref_sa, atol=5e-2, rtol=5e-2), f"max abs err {err_sa}"

    print("KERNEL_OK")
</pallas_src>

<mosaic_0001>
module attributes {stable_mosaic.version = 11 : i64} {
  func.func @_multi_linear_kernel(%arg0: i32, %arg1: i32, %arg2: i32, %arg3: memref<16x128xbf16, #tpu.memory_space<vmem>>, %arg4: memref<128x128xbf16, #tpu.memory_space<vmem>>, %arg5: memref<1x128xf32, #tpu.memory_space<vmem>>, %arg6: memref<16x128xbf16, #tpu.memory_space<vmem>>, %arg7: memref<16x128xf32, #tpu.memory_space<vmem>>) attributes {dimension_semantics = [#tpu.dimension_semantics<parallel>, #tpu.dimension_semantics<parallel>, #tpu.dimension_semantics<arbitrary>], iteration_bounds = array<i64: 1, 1, 1>, scalar_prefetch = 0 : i64, scratch_operands = 1 : i64, tpu.core_type = #tpu.core_type<tc>, window_params = [{transform_indices = @transform_0, window_bounds = array<i64: 16, 128>}, {transform_indices = @transform_1, window_bounds = array<i64: 128, 128>}, {transform_indices = @transform_2, window_bounds = array<i64: 1, 128>}, {transform_indices = @transform_3, window_bounds = array<i64: 16, 128>}]} {
    %c0_i32 = arith.constant 0 : i32
    %0 = arith.cmpi eq, %arg2, %c0_i32 : i32
    %1 = arith.extui %0 : i1 to i32
    %c0_i32_0 = arith.constant 0 : i32
    %2 = arith.cmpi ne, %1, %c0_i32_0 : i32
    scf.if %2 {
      %cst_10 = arith.constant 0.000000e+00 : f32
      %12 = vector.broadcast %cst_10 : f32 to vector<16x128xf32>
      %c0_11 = arith.constant 0 : index
      %c0_12 = arith.constant 0 : index
      %13 = vector.load %arg7[%c0_11, %c0_12] : memref<16x128xf32, #tpu.memory_space<vmem>>, vector<16x128xf32>
      tpu.vector_store %arg7[%c0_11, %c0_12], %12 {strides = array<i32>} : memref<16x128xf32, #tpu.memory_space<vmem>>, vector<16x128xf32>,
    } else {
    }
    %c0 = arith.constant 0 : index
    %c0_1 = arith.constant 0 : index
    %3 = vector.load %arg3[%c0, %c0_1] : memref<16x128xbf16, #tpu.memory_space<vmem>>, vector<16x128xbf16>
    %c0_2 = arith.constant 0 : index
    %c0_3 = arith.constant 0 : index
    %4 = vector.load %arg7[%c0_2, %c0_3] : memref<16x128xf32, #tpu.memory_space<vmem>>, vector<16x128xf32>
    %c0_4 = arith.constant 0 : index
    %c0_5 = arith.constant 0 : index
    %5 = vector.load %arg4[%c0_4, %c0_5] : memref<128x128xbf16, #tpu.memory_space<vmem>>, vector<128x128xbf16>
    %cst = arith.constant dense<0.000000e+00> : vector<16x128xf32>
    %6 = tpu.matmul %3, %5, %cst {dimension_numbers = #tpu.dot_dimension_numbers<[1], [1], [0], [0], [0, 0, 1, 0], [], []>} : vector<16x128xbf16>, vector<128x128xbf16>, vector<16x128xf32> -> vector<16x128xf32>
    %7 = arith.addf %4, %6 : vector<16x128xf32>
    %c0_6 = arith.constant 0 : index
    %c0_7 = arith.constant 0 : index
    %8 = vector.load %arg7[%c0_6, %c0_7] : memref<16x128xf32, #tpu.memory_space<vmem>>, vector<16x128xf32>
    tpu.vector_store %arg7[%c0_6, %c0_7], %7 {strides = array<i32>} : memref<16x128xf32, #tpu.memory_space<vmem>>, vector<16x128xf32>,
    %c0_i32_8 = arith.constant 0 : i32
    %9 = arith.cmpi eq, %arg2, %c0_i32_8 : i32
    %10 = arith.extui %9 : i1 to i32
    %c0_i32_9 = arith.constant 0 : i32
    %11 = arith.cmpi ne, %10, %c0_i32_9 : i32
    scf.if %11 {
      %c0_10 = arith.constant 0 : index
      %c0_11 = arith.constant 0 : index
      %12 = vector.load %arg7[%c0_10, %c0_11] : memref<16x128xf32, #tpu.memory_space<vmem>>, vector<16x128xf32>
      %c0_12 = arith.constant 0 : index
      %c0_13 = arith.constant 0 : index
      %13 = vector.load %arg5[%c0_12, %c0_13] : memref<1x128xf32, #tpu.memory_space<vmem>>, vector<1x128xf32>
      %14 = vector.broadcast %13 : vector<1x128xf32> to vector<16x128xf32>
      %15 = arith.addf %12, %14 : vector<16x128xf32>
      %16 = arith.truncf %15 : vector<16x128xf32> to vector<16x128xbf16>
      %c0_14 = arith.constant 0 : index
      %c0_15 = arith.constant 0 : index
      %17 = vector.load %arg6[%c0_14, %c0_15] : memref<16x128xbf16, #tpu.memory_space<vmem>>, vector<16x128xbf16>
      tpu.vector_store %arg6[%c0_14, %c0_15], %16 {strides = array<i32>} : memref<16x128xbf16, #tpu.memory_space<vmem>>, vector<16x128xbf16>,
    } else {
    }
    return
  }
  func.func @transform_0(%arg0: i32, %arg1: i32, %arg2: i32) -> (i32, i32) {
    %c0_i32 = arith.constant 0 : i32
    return %arg0, %arg2 : i32, i32
  }
  func.func @transform_1(%arg0: i32, %arg1: i32, %arg2: i32) -> (i32, i32) {
    %c0_i32 = arith.constant 0 : i32
    return %arg1, %arg2 : i32, i32
  }
  func.func @transform_2(%arg0: i32, %arg1: i32, %arg2: i32) -> (i32, i32) {
    %c0_i32 = arith.constant 0 : i32
    %c0_i32_0 = arith.constant 0 : i32
    return %c0_i32, %arg1 : i32, i32
  }
  func.func @transform_3(%arg0: i32, %arg1: i32, %arg2: i32) -> (i32, i32) {
    %c0_i32 = arith.constant 0 : i32
    return %arg0, %arg1 : i32, i32
  }
}

</mosaic_0001>

<llo_original>
// kernel: tpu_custom_call.1
$region0: #{tpu_custom_call.1}
  #allocation0 [shape = 'u32[]', space=smem, size = 0x4, offset = 0x4, fixed_abs, tag = 'smem constant byte address 0x4 - core index']
  #allocation1 [shape = 'u32[144,128]{1,0:T(1,128)}', space=vmem, size = 0x12000, scoped, tag = 'internal scratch']
  #allocation2 [shape = 'f32[16,128]{1,0:T(8,128)}', space=vmem, size = 0x2000, scoped, tag = 'scratch operand']
  %s0 = inlined_call_operand.hbm [shape: bf16[16,128], index: 0, kind: input, shape index: {}]
  %s1 = inlined_call_operand.hbm [shape: bf16[128,128], index: 1, kind: input, shape index: {}]
  %s2 = inlined_call_operand.vmem [shape: f32[1,128], index: 2, kind: input, shape index: {}]
  %s3 = inlined_call_operand.hbm [shape: bf16[16,128], index: 3, kind: output, shape index: {}]
  %s4 = sld [smem:[#allocation0]]
  $region38: #{tpu_custom_call.1} parent=0
    _
  %s6 = ssub.s32 1, %s4
  %s7 = scalar_select 0, %s6, %s4
  $region1: #{tpu_custom_call.1} parent=0
    #allocation3 [shape = 'u8[4096]{0}', space=vmem, size = 0x1000, scoped, tag = 'input window, operand 0, single buffered']
    #allocation4 [shape = 's32[1]{0}', space=sflag, size = 0x4, scoped, tag = 'scoped memory for tpu_custom_call.1']
    #allocation5 [shape = 's32[1]{0}', space=sflag, size = 0x4, scoped, tag = 'scoped memory for tpu_custom_call.1']
    #allocation6 [shape = 'u8[32768]{0}', space=vmem, size = 0x8000, scoped, tag = 'input window, operand 1, single buffered']
    #allocation7 [shape = 's32[1]{0}', space=sflag, size = 0x4, scoped, tag = 'scoped memory for tpu_custom_call.1']
    #allocation8 [shape = 'u8[4096]{0}', space=vmem, size = 0x1000, scoped, tag = 'output window, operand 0, single buffered']
    %8 = vsyncpa [#allocation4], 0
    %9 = vsyncpa [#allocation7], 0
    %10 = vsyncpa [#allocation5], 0
    // Predicated region
    $region2: #{tpu_custom_call.1} parent=1 // pred_check
      _
    $region3: #{tpu_custom_call.1} parent=1 // pred_check_branch
      %12 = sbr.rel (0) target = $region5
    $region4: #{tpu_custom_call.1} parent=1 // pred_region
      %s14 = ssub.s32 128, 128
      %15 = vsyncadd [#allocation4], %s14
      %s16 = sshll.u32 [#allocation3], 4
      %s17 = int_to_ptr.vmem [resolvable:$true] %s16
      %22 = dma.hbm_to_vmem [thread:$0]  %s0, 128, %s17, [#allocation4], 64, 64, 4
    $region5: #{tpu_custom_call.1} parent=1 // pred_fallthru
      _
    // Predicated region
    $region6: #{tpu_custom_call.1} parent=1 // pred_check
      _
    $region7: #{tpu_custom_call.1} parent=1 // pred_check_branch
      %24 = sbr.rel (0) target = $region9
    $region8: #{tpu_custom_call.1} parent=1 // pred_region
      %s26 = ssub.s32 1024, 1024
      %27 = vsyncadd [#allocation7], %s26
      %s28 = sshll.u32 [#allocation6], 4
      %s29 = int_to_ptr.vmem [resolvable:$true] %s28
      %34 = dma.hbm_to_vmem [thread:$0]  %s1, 1024, %s29, [#allocation7], 64, 64, 4
    $region9: #{tpu_custom_call.1} parent=1 // pred_fallthru
      _
    // Predicated region
    $region10: #{tpu_custom_call.1} parent=1 // pred_check
      _
    $region11: #{tpu_custom_call.1} parent=1 // pred_check_branch
      %36 = sbr.rel (0) target = $region13
    $region12: #{tpu_custom_call.1} parent=1 // pred_region
      _
    $region13: #{tpu_custom_call.1} parent=1 // pred_fallthru
      _
    // Predicated region
    $region14: #{tpu_custom_call.1} parent=1 // pred_check
      _
    $region15: #{tpu_custom_call.1} parent=1 // pred_check_branch
      %38 = sbr.rel (0) target = $region17
    $region16: #{tpu_custom_call.1} parent=1 // pred_region
      %39 = dma.done [#allocation4], 128
    $region17: #{tpu_custom_call.1} parent=1 // pred_fallthru
      _
    // Predicated region
    $region18: #{tpu_custom_call.1} parent=1 // pred_check
      _
    $region19: #{tpu_custom_call.1} parent=1 // pred_check_branch
      %41 = sbr.rel (0) target = $region21
    $region20: #{tpu_custom_call.1} parent=1 // pred_region
      %42 = dma.done [#allocation7], 1024
    $region21: #{tpu_custom_call.1} parent=1 // pred_fallthru
      _
    %p44 = scmp.eq.s32.totalorder 0, 0
    // Predicated region
    $region22: #{tpu_custom_call.1} parent=1 // pred_check
      %p45 = pneg %p44
    $region23: #{tpu_custom_call.1} parent=1 // pred_check_branch
      %47 = sbr.rel (%p45) target = $region25
    $region24: #{tpu_custom_call.1} parent=1 // pred_region
      %48 = vst [vmem:[#allocation2] sm:$0xff] 0.0
      %49 = vst [vmem:[#allocation2 + $0x8] sm:$0xff] 0.0
    $region25: #{tpu_custom_call.1} parent=1 // pred_fallthru
      _
    %v50 = vld [vmem:[#allocation3] sm:$0xf]
    %v51 = vld [vmem:[#allocation3 + $0x4] sm:$0xf]
    %v52 = vld [vmem:[#allocation2] sm:$0xff]
    %v53 = vld [vmem:[#allocation2 + $0x8] sm:$0xff]
    %v54 = vld [vmem:[#allocation6] sm:$0xf]
    %v55 = vld [vmem:[#allocation6 + $0x4] sm:$0xf]
    %v56 = vld [vmem:[#allocation6 + $0x8] sm:$0xf]
    %v57 = vld [vmem:[#allocation6 + $0xc] sm:$0xf]
    %v58 = vld [vmem:[#allocation6 + $0x10] sm:$0xf]
    %v59 = vld [vmem:[#allocation6 + $0x14] sm:$0xf]
    %v60 = vld [vmem:[#allocation6 + $0x18] sm:$0xf]
    %v61 = vld [vmem:[#allocation6 + $0x1c] sm:$0xf]
    %v62 = vld [vmem:[#allocation6 + $0x20] sm:$0xf]
    %v63 = vld [vmem:[#allocation6 + $0x24] sm:$0xf]
    %v64 = vld [vmem:[#allocation6 + $0x28] sm:$0xf]
    %v65 = vld [vmem:[#allocation6 + $0x2c] sm:$0xf]
    %v66 = vld [vmem:[#allocation6 + $0x30] sm:$0xf]
    %v67 = vld [vmem:[#allocation6 + $0x34] sm:$0xf]
    %v68 = vld [vmem:[#allocation6 + $0x38] sm:$0xf]
    %v69 = vld [vmem:[#allocation6 + $0x3c] sm:$0xf]
    %v72 = vunpack.c.l.b16 %v50
    %v73 = vunpack.c.l.b16 %v51
    %v74 = vpack.c.b16 %v73, %v72
    %v92 = vunpack.c.l.b16 %v54
    %v93 = vunpack.c.l.b16 %v55
    %v94 = vunpack.c.l.b16 %v56
    %v95 = vunpack.c.l.b16 %v57
    %v96 = vunpack.c.l.b16 %v58
    %v97 = vunpack.c.l.b16 %v59
    %v98 = vunpack.c.l.b16 %v60
    %v99 = vunpack.c.l.b16 %v61
    %v100 = vunpack.c.l.b16 %v62
    %v101 = vunpack.c.l.b16 %v63
    %v102 = vunpack.c.l.b16 %v64
    %v103 = vunpack.c.l.b16 %v65
    %v104 = vunpack.c.l.b16 %v66
    %v105 = vunpack.c.l.b16 %v67
    %v106 = vunpack.c.l.b16 %v68
    %v107 = vunpack.c.l.b16 %v69
    %v108 = vpack.c.b16 %v93, %v92
    %v109 = vpack.c.b16 %v95, %v94
    %v110 = vpack.c.b16 %v97, %v96
    %v111 = vpack.c.b16 %v99, %v98
    %v112 = vpack.c.b16 %v101, %v100
    %v113 = vpack.c.b16 %v103, %v102
    %v114 = vpack.c.b16 %v105, %v104
    %v115 = vpack.c.b16 %v107, %v106
    %124 = vmatprep.subr.bf16.mxu0 0
    %125 = vmatpush1.bf16.xpose.msra.mxu0 %v115
    %126 = vmatprep.subr.bf16.mxu0 0
    %127 = vmatpush1.bf16.xpose.msra.mxu0 %v114
    %128 = vmatprep.subr.bf16.mxu0 0
    %129 = vmatpush1.bf16.xpose.msra.mxu0 %v113
    %130 = vmatprep.subr.bf16.mxu0 0
    %131 = vmatpush1.bf16.xpose.msra.mxu0 %v112
    %132 = vmatprep.subr.bf16.mxu0 0
    %133 = vmatpush1.bf16.xpose.msra.mxu0 %v111
    %134 = vmatprep.subr.bf16.mxu0 0
    %135 = vmatpush1.bf16.xpose.msra.mxu0 %v110
    %136 = vmatprep.subr.bf16.mxu0 0
    %137 = vmatpush1.bf16.xpose.msra.mxu0 %v109
    %138 = vmatprep.subr.bf16.mxu0 0
    %139 = vmatpush1.bf16.xpose.msra.mxu0 %v108
    %140 = vmatprep.subr.bf16.mxu0 0
    %141 = vmatpush2.bf16.xpose.msra.mxu0 0
    %142 = vmatprep.subr.bf16.mxu0 0
    %143 = vmatpush2.bf16.xpose.msra.mxu0 0
    %144 = vmatprep.subr.bf16.mxu0 0
    %145 = vmatpush2.bf16.xpose.msra.mxu0 0
    %146 = vmatprep.subr.bf16.mxu0 0
    %147 = vmatpush2.bf16.xpose.msra.mxu0 0
    %148 = vmatprep.subr.bf16.mxu0 0
    %149 = vmatpush2.bf16.xpose.msra.mxu0 0
    %150 = vmatprep.subr.bf16.mxu0 0
    %151 = vmatpush2.bf16.xpose.msra.mxu0 0
    %152 = vmatprep.subr.bf16.mxu0 0
    %153 = vmatpush2.bf16.xpose.msra.mxu0 0
    %154 = vmatprep.subr.bf16.mxu0 0
    %155 = vmatpush2.bf16.xpose.msra.mxu0 0
    %156 = vmatprep.mubr.bf16.mxu0 0
    %157 = vmatmul.mubr.bf16.gmra.mxu0 %v74
    %v158 = vpop.f32.mrf.mxu0
    %v159 = vadd.f32 0.0, %v158
    %v160 = vpop.f32.mrf.mxu0
    %v161 = vpop.f32.mrf.mxu0
    %v162 = vadd.f32 0.0, %v161
    %v163 = vpop.f32.mrf.mxu0
    %164 = vdwg.mxu0
    %v165 = vadd.f32 %v52, %v159
    %v166 = vadd.f32 %v53, %v162
    %167 = vst [vmem:[#allocation2] sm:$0xff] %v165
    %168 = vst [vmem:[#allocation2 + $0x8] sm:$0xff] %v166
    // Predicated region
    $region26: #{tpu_custom_call.1} parent=1 // pred_check
      %p169 = pneg %p44
    $region27: #{tpu_custom_call.1} parent=1 // pred_check_branch
      %171 = sbr.rel (%p169) target = $region29
    $region28: #{tpu_custom_call.1} parent=1 // pred_region
      %v172 = vld [vmem:[#allocation2] sm:$0xff]
      %v173 = vld [vmem:[#allocation2 + $0x8] sm:$0xff]
      %v174 = vld [vmem:[%s2] sm:$0x1]
      %v176 = vlaneseq
      %v177 = vshrl.u32 %v176, 7
      %v178 = vsub.s32 0, %v177
      %v179 = vrot.slane %v174, %v178
      %v181 = vadd.f32 %v172, %v179
      %v182 = vadd.f32 %v173, %v179
      %v183 = vpack.c.bf16 %v182, %v181
      %v185 = vunpack.c.l.b16 %v183
      %v186 = vunpack.c.h.b16 %v183
      %v187 = vpack.c.b16 %v185, %v185
      %v188 = vpack.c.b16 %v186, %v186
      %191 = vst [vmem:[#allocation8] sm:$0xf] %v187
      %192 = vst [vmem:[#allocation8 + $0x4] sm:$0xf] %v188
    $region29: #{tpu_custom_call.1} parent=1 // pred_fallthru
      _
    // Predicated region
    $region30: #{tpu_custom_call.1} parent=1 // pred_check
      _
    $region31: #{tpu_custom_call.1} parent=1 // pred_check_branch
      %194 = sbr.rel (0) target = $region33
    $region32: #{tpu_custom_call.1} parent=1 // pred_region
      %s196 = ssub.s32 128, 128
      %197 = vsyncadd [#allocation5], %s196
      %s198 = sshll.u32 [#allocation8], 4
      %s199 = int_to_ptr.vmem [resolvable:$true] %s198
      %204 = dma.vmem_to_hbm [thread:$0]  %s199, 128, %s3, [#allocation5], 64, 64, 4
    $region33: #{tpu_custom_call.1} parent=1 // pred_fallthru
      _
    // Predicated region
    $region34: #{tpu_custom_call.1} parent=1 // pred_check
      _
    $region35: #{tpu_custom_call.1} parent=1 // pred_check_branch
      %206 = sbr.rel (0) target = $region37
    $region36: #{tpu_custom_call.1} parent=1 // pred_region
      %207 = dma.done [#allocation5], 128
    $region37: #{tpu_custom_call.1} parent=1 // pred_fallthru
      _
    %208 = vsyncpa [#allocation4], 1
    %209 = vsyncpa [#allocation7], 1
    %210 = vsyncpa [#allocation5], 1

</llo_original>
